<compile_context>
chip_gen: v5e
topology: v5e:2x2
jax: 0.10.0
libtpu: 0.0.40
codegen_flags: <defaults>
</compile_context>

<pallas_src>
import functools

import jax
import jax.numpy as jnp
from jax.experimental import pallas as pl
from jax.experimental.pallas import tpu as pltpu

EPS = 1e-5                      # nn.BatchNorm2d default eps
LANES = 128
VMEM_LIMIT = 64 * 1024 * 1024   # explicit scoped-VMEM budget for every pallas_call


def _round_up(x, m):
    return (x + m - 1) // m * m


def _pick_row_block(h, w, cap=1024):
    """Largest divisor th of h with th*w <= cap rows and (th*w) % 8 == 0."""
    good = [t for t in range(1, h + 1)
            if h % t == 0 and t * w <= cap and (t * w) % 8 == 0]
    return max(good) if good else h


def _pick_c_block(c, hin, wmax, cap_bytes=2 << 20):
    cands = [t for t in range(1, c + 1) if c % t == 0]
    good = [t for t in cands if t * hin * wmax * 4 <= cap_bytes]
    return max(good) if good else 1


def _pick_hpass_rows(hout, row_elems, cap_bytes=4 << 20):
    cands = [t for t in range(1, hout + 1)
             if hout % t == 0 and (t % 8 == 0 or t == hout)]
    good = [t for t in cands if t * row_elems * 2 <= cap_bytes]
    return max(good) if good else min(cands)


# ---------------------------------------------------------------------------
# Bilinear upsample (align_corners=True): W-pass in NCHW, H-pass in NHWC.
# ---------------------------------------------------------------------------
def _interp_matrix(n_in, n_out):
    """(n_out, n_in) bilinear interpolation matrix, align_corners=True (PyTorch)."""
    if n_in == 1:
        return jnp.ones((n_out, 1), jnp.float32)
    pos = jnp.arange(n_out, dtype=jnp.float32) * (n_in - 1) / (n_out - 1)
    lo = jnp.clip(jnp.floor(pos), 0, n_in - 2).astype(jnp.int32)
    frac = pos - lo.astype(jnp.float32)
    eye = jnp.eye(n_in, dtype=jnp.float32)
    return (1.0 - frac)[:, None] * eye[lo] + frac[:, None] * eye[lo + 1]


def _upsample_w_kernel(x_ref, awt_ref, o_ref, *, tc, hin, win, wout):
    # x: (1, tc, Hin, Win) NCHW;  out = X @ A_w^T  (W is minor -> plain lane matmul).
    x2 = x_ref[0].reshape(tc * hin, win)
    t = jnp.dot(x2, awt_ref[...], preferred_element_type=jnp.float32)
    o_ref[0] = t.reshape(tc, hin, wout)


def _upsample_h_kernel(x_ref, ah_ref, o_ref, *, th, wout, c, cpad):
    # x: (1, Hin, Wout*C) NHWC-flat;  out rows = A_h_block @ X, channel-padded bf16.
    t = jnp.dot(ah_ref[...], x_ref[0], preferred_element_type=jnp.float32)   # (th, Wout*C)
    t = t.reshape(th, wout, c).astype(jnp.bfloat16)
    if cpad > c:
        t = jnp.concatenate(
            [t, jnp.zeros((th, wout, cpad - c), jnp.bfloat16)], axis=-1)
    o_ref[0] = t


def bilinear_upsample_padded(x_nchw, scale_factor, c_pad):
    """Bilinear 2D upsample -> NHWC, channels zero-padded to c_pad, bf16."""
    n, c, hin, win = x_nchw.shape
    hout, wout = hin * scale_factor, win * scale_factor
    x = x_nchw.astype(jnp.float32)
    a_wt = _interp_matrix(win, wout).T            # (Win, Wout)
    a_h = _interp_matrix(hin, hout)               # (Hout, Hin)

    # ---- W-pass in NCHW (no kron; operand is just the (Win, Wout) matrix) ----
    tc = _pick_c_block(c, hin, max(win, wout))
    wpass = functools.partial(_upsample_w_kernel, tc=tc, hin=hin, win=win, wout=wout)
    xw = pl.pallas_call(
        wpass,
        out_shape=jax.ShapeDtypeStruct((n, c, hin, wout), jnp.float32),
        grid=(n, c // tc),
        in_specs=[pl.BlockSpec((1, tc, hin, win), lambda i, j: (i, j, 0, 0)),
                  pl.BlockSpec((win, wout), lambda i, j: (0, 0))],
        out_specs=pl.BlockSpec((1, tc, hin, wout), lambda i, j: (i, j, 0, 0)),
        compiler_params=pltpu.CompilerParams(
            dimension_semantics=("parallel", "parallel"),
            vmem_limit_bytes=VMEM_LIMIT),
    )(x, a_wt)

    # TODO(synk): this NCHW->NHWC relayout of the half-upsampled tensor is plain JAX; it
    # could be folded into the H-pass with an in-kernel transpose.
    xw_nhwc = jnp.transpose(xw, (0, 2, 3, 1)).reshape(n, hin, wout * c)

    # ---- H-pass in NHWC; channel zero-pad + bf16 cast fused into the output store ----
    th = _pick_hpass_rows(hout, wout * max(c_pad, c))
    hpass = functools.partial(_upsample_h_kernel, th=th, wout=wout, c=c, cpad=c_pad)
    return pl.pallas_call(
        hpass,
        out_shape=jax.ShapeDtypeStruct((n, hout, wout, c_pad), jnp.bfloat16),
        grid=(n, hout // th),
        in_specs=[pl.BlockSpec((1, hin, wout * c), lambda i, j: (i, 0, 0)),
                  pl.BlockSpec((th, hin), lambda i, j: (j, 0))],
        out_specs=pl.BlockSpec((1, th, wout, c_pad), lambda i, j: (i, j, 0, 0)),
        compiler_params=pltpu.CompilerParams(
            dimension_semantics=("parallel", "parallel"),
            vmem_limit_bytes=VMEM_LIMIT),
    )(xw_nhwc, a_h)


# ---------------------------------------------------------------------------
# 3x3 conv (stride 1, pad 1) on multi-part (K-concatenated) inputs,
# + BatchNorm partial statistics, row-block tiled, bf16 output.
# ---------------------------------------------------------------------------
def _conv3x3_kernel(*refs, nparts, th, wdim, cps, cout_p, fuse_bn_relu):
    hb = pl.program_id(1)
    last = pl.num_programs(1) - 1
    w_ref = refs[3 * nparts]
    sc_ref = refs[3 * nparts + 1]
    sh_ref = refs[3 * nparts + 2]
    y_ref = refs[3 * nparts + 3]
    st_ref = refs[3 * nparts + 4]
    acc_ref = refs[3 * nparts + 5]

    koff = 0
    first = True
    for p in range(nparts):
        x_ref, top_ref, bot_ref = refs[3 * p], refs[3 * p + 1], refs[3 * p + 2]
        cp = cps[p]

        def load(ref, koff=koff, cp=cp):
            v = ref[0]
            if fuse_bn_relu:
                # Fuse the previous layer's BN affine + ReLU into the load (f32 math).
                v = jnp.maximum(
                    v.astype(jnp.float32) * sc_ref[0, koff:koff + cp]
                    + sh_ref[0, koff:koff + cp], 0.0).astype(jnp.bfloat16)
            return v

        mid = load(x_ref)                                        # (th, W, cp)
        top = load(top_ref)                                      # (1,  W, cp)
        bot = load(bot_ref)
        # Zero halo rows at image borders (conv zero-padding), AFTER the fused activation.
        zrow = jnp.zeros_like(top)
        top = jnp.where(hb > 0, top, zrow)
        bot = jnp.where(hb < last, bot, zrow)

        xin = jnp.concatenate([top, mid, bot], axis=0)           # (th+2, W, cp)
        zcol = jnp.zeros((th + 2, 1, cp), jnp.bfloat16)
        xin = jnp.concatenate([zcol, xin, zcol], axis=1)         # (th+2, W+2, cp)

        # 9 accumulating MXU dots per part (no 9*Cin im2col patch is materialized).
        for kh in range(3):
            rows = xin[kh:kh + th]                               # (th, W+2, cp)
            for kw in range(3):
                tap = rows[:, kw:kw + wdim, :].reshape(th * wdim, cp)
                wk = w_ref[kh * 3 + kw, koff:koff + cp, :]       # (cp, Cout_p)
                contrib = jnp.dot(tap, wk, preferred_element_type=jnp.float32)
                if first:
                    acc_ref[...] = contrib
                    first = False
                else:
                    acc_ref[...] += contrib
        koff += cp

    acc = acc_ref[...]
    y_ref[...] = acc.reshape(1, th * wdim, cout_p).astype(jnp.bfloat16)
    # Per-block BN partials from the f32 accumulator: (sum, centered M2).
    cnt = float(th * wdim)
    s1 = jnp.sum(acc, axis=0, keepdims=True)                     # (1, Cout_p)
    mu = s1 / cnt
    m2 = jnp.sum(jnp.square(acc - mu), axis=0, keepdims=True)
    st_ref[...] = jnp.concatenate([s1, m2], axis=0).reshape(1, 1, 2, cout_p)


def conv3x3_pass(parts, w2col, in_scale, in_shift, *, fuse_bn_relu, row_cap=1024):
    n, h, w, _ = parts[0].shape
    cps = tuple(p.shape[3] for p in parts)
    ctot = sum(cps)
    cout_p = w2col.shape[2]
    th = _pick_row_block(h, w, cap=row_cap)
    hb = h // th

    kernel = functools.partial(
        _conv3x3_kernel, nparts=len(parts), th=th, wdim=w, cps=cps,
        cout_p=cout_p, fuse_bn_relu=fuse_bn_relu)

    in_specs, args = [], []
    for part, cp in zip(parts, cps):
        in_specs += [
            pl.BlockSpec((1, th, w, cp), lambda i, j: (i, j, 0, 0)),
            pl.BlockSpec((1, 1, w, cp),
                         lambda i, j: (i, jnp.maximum(j * th - 1, 0), 0, 0)),
            pl.BlockSpec((1, 1, w, cp),
                         lambda i, j: (i, jnp.minimum(j * th + th, h - 1), 0, 0)),
        ]
        args += [part, part, part]
    in_specs += [
        pl.BlockSpec((9, ctot, cout_p), lambda i, j: (0, 0, 0)),
        pl.BlockSpec((1, ctot), lambda i, j: (0, 0)),
        pl.BlockSpec((1, ctot), lambda i, j: (0, 0)),
    ]
    args += [w2col, in_scale, in_shift]

    return pl.pallas_call(
        kernel,
        out_shape=(
            jax.ShapeDtypeStruct((n, h * w, cout_p), jnp.bfloat16),   # raw conv output
            jax.ShapeDtypeStruct((n, hb, 2, cout_p), jnp.float32),    # BN partials
        ),
        grid=(n, hb),
        in_specs=in_specs,
        out_specs=(
            pl.BlockSpec((1, th * w, cout_p), lambda i, j: (i, j, 0)),
            pl.BlockSpec((1, 1, 2, cout_p), lambda i, j: (i, j, 0, 0)),
        ),
        scratch_shapes=[pltpu.VMEM((th * w, cout_p), jnp.float32)],
        compiler_params=pltpu.CompilerParams(
            dimension_semantics=("parallel", "parallel"),
            vmem_limit_bytes=VMEM_LIMIT),
    )(*args)


def bn_scale_shift(stats, blk_count, gamma_p, beta_p):
    """Combine per-block (sum, centered-M2) partials -> per-channel affine (training BN)."""
    s1 = stats[:, :, 0, :]                               # (N, HB, C) per-block sums
    m2 = stats[:, :, 1, :]                               # per-block centered sum-of-squares
    nblk = s1.shape[0] * s1.shape[1]
    total = nblk * blk_count
    mean = jnp.sum(s1, axis=(0, 1)) / total
    mean_b = s1 / blk_count
    m2_tot = jnp.sum(m2, axis=(0, 1)) + blk_count * jnp.sum(
        jnp.square(mean_b - mean), axis=(0, 1))
    var = jnp.maximum(m2_tot / total, 0.0)               # biased (training-mode) variance
    scale = gamma_p * jax.lax.rsqrt(var + EPS)
    shift = beta_p - mean * scale
    return scale[None].astype(jnp.float32), shift[None].astype(jnp.float32)


# ---------------------------------------------------------------------------
# Final BN affine + ReLU (tiled elementwise pass).
# ---------------------------------------------------------------------------
def _bn_act_kernel(y_ref, sc_ref, sh_ref, o_ref):
    o_ref[...] = jnp.maximum(
        y_ref[...].astype(jnp.float32) * sc_ref[...] + sh_ref[...], 0.0)


def bn_act_pass(y, scale, shift):
    n, m, c = y.shape
    tm = _pick_row_block(m, 1, cap=2048)
    return pl.pallas_call(
        _bn_act_kernel,
        out_shape=jax.ShapeDtypeStruct((n, m, c), jnp.float32),
        grid=(n, m // tm),
        in_specs=[
            pl.BlockSpec((1, tm, c), lambda i, j: (i, j, 0)),
            pl.BlockSpec((1, c), lambda i, j: (0, 0)),
            pl.BlockSpec((1, c), lambda i, j: (0, 0)),
        ],
        out_specs=pl.BlockSpec((1, tm, c), lambda i, j: (i, j, 0)),
        compiler_params=pltpu.CompilerParams(
            dimension_semantics=("parallel", "parallel"),
            vmem_limit_bytes=VMEM_LIMIT),
    )(y, scale, shift)


# ---------------------------------------------------------------------------
# Parameters + forward
# ---------------------------------------------------------------------------
def init_params(key, in_channels, out_channels):
    ks = jax.random.split(key, 6)

    def conv_w(k, cin, cout):
        return jax.random.normal(k, (3, 3, cin, cout), jnp.float32) / jnp.sqrt(9.0 * cin)

    return dict(
        w1=conv_w(ks[0], in_channels, out_channels),
        g1=1.0 + 0.1 * jax.random.normal(ks[1], (out_channels,), jnp.float32),
        b1=0.1 * jax.random.normal(ks[2], (out_channels,), jnp.float32),
        w2=conv_w(ks[3], out_channels, out_channels),
        g2=1.0 + 0.1 * jax.random.normal(ks[4], (out_channels,), jnp.float32),
        b2=0.1 * jax.random.normal(ks[5], (out_channels,), jnp.float32),
    )


def _pad_conv_weight(w, part_sizes, part_pads, cout_p):
    """(3,3,Cin,Cout) -> (9, sum(part_pads), Cout_p) bf16, per-part channel padding."""
    cout = w.shape[3]
    pieces, off = [], 0
    for sz, pz in zip(part_sizes, part_pads):
        piece = w[:, :, off:off + sz, :]
        piece = jnp.pad(piece, ((0, 0), (0, 0), (0, pz - sz), (0, cout_p - cout)))
        pieces.append(piece)
        off += sz
    wp = jnp.concatenate(pieces, axis=2) if len(pieces) > 1 else pieces[0]
    return wp.reshape(9, sum(part_pads), cout_p).astype(jnp.bfloat16)


def decoder_bottleneck_forward(x_nchw, params, x_concat_nchw=None, x_res_nchw=None,
                               scale_factor=2):
    n, c_up, hin, win = x_nchw.shape
    hout, wout = hin * scale_factor, win * scale_factor

    # Upsample + channel pad + bf16 cast fused; result is conv1's first input part.
    cu_p = _round_up(c_up, LANES)
    parts = [bilinear_upsample_padded(x_nchw, scale_factor, cu_p)]
    raw_cs = [c_up]

    # torch.cat along channels (only when x_concat is given; x_res only if both given).
    extras = []
    if x_concat_nchw is not None:
        extras.append(x_concat_nchw)
        if x_res_nchw is not None:
            extras.append(x_res_nchw)
    for e in extras:
        # TODO(synk): skip-connection NCHW->NHWC relayout + pad + bf16 cast is plain JAX;
        # it is one unavoidable relayout pass that could become its own Pallas kernel.
        t = jnp.transpose(e, (0, 2, 3, 1)).astype(jnp.float32)
        ce = t.shape[-1]
        ce_p = _round_up(ce, LANES)
        parts.append(
            jnp.pad(t, ((0, 0), (0, 0), (0, 0), (0, ce_p - ce))).astype(jnp.bfloat16))
        raw_cs.append(ce)

    part_pads = [p.shape[-1] for p in parts]
    ctot_p = sum(part_pads)
    cout = params["w1"].shape[3]
    cout_p = _round_up(cout, LANES)

    # TODO(synk): at tiny raw channel counts, padding each part/tap to 128 lanes wastes
    # MXU FLOPs; a joint 9*Cin padding scheme would fix it but is irrelevant at real sizes.
    w1 = _pad_conv_weight(params["w1"], raw_cs, part_pads, cout_p)
    w2 = _pad_conv_weight(params["w2"], [cout], [cout_p], cout_p)
    g1 = jnp.pad(params["g1"], (0, cout_p - cout)).astype(jnp.float32)
    b1 = jnp.pad(params["b1"], (0, cout_p - cout)).astype(jnp.float32)
    g2 = jnp.pad(params["g2"], (0, cout_p - cout)).astype(jnp.float32)
    b2 = jnp.pad(params["b2"], (0, cout_p - cout)).astype(jnp.float32)

    ident_sc = jnp.ones((1, ctot_p), jnp.float32)
    ident_sh = jnp.zeros((1, ctot_p), jnp.float32)

    # conv1 (3x3) on K-concatenated parts -> raw bf16 output + BN partials
    y1, st1 = conv3x3_pass(parts, w1, ident_sc, ident_sh, fuse_bn_relu=False)
    sc1, sh1 = bn_scale_shift(st1, (hout * wout) // st1.shape[1], g1, b1)

    # conv2 (3x3) with BN1 affine + ReLU fused into its input load
    y1_nhwc = y1.reshape(n, hout, wout, cout_p)
    y2, st2 = conv3x3_pass([y1_nhwc], w2, sc1, sh1, fuse_bn_relu=True)
    sc2, sh2 = bn_scale_shift(st2, (hout * wout) // st2.shape[1], g2, b2)

    # final BN2 affine + ReLU, drop channel padding, back to NCHW
    out = bn_act_pass(y2, sc2, sh2).reshape(n, hout, wout, cout_p)[..., :cout]
    return jnp.transpose(out, (0, 3, 1, 2))


# ---------------------------------------------------------------------------
# Pure-JAX reference (XLA convs) for numerical sanity check
# ---------------------------------------------------------------------------
def _ref_forward(x_nchw, params, x_concat_nchw=None, x_res_nchw=None, scale_factor=2):
    x = jnp.transpose(x_nchw, (0, 2, 3, 1)).astype(jnp.float32)
    _, hin, win, _ = x.shape
    a_h = _interp_matrix(hin, hin * scale_factor)
    a_w = _interp_matrix(win, win * scale_factor)
    hp = jax.lax.Precision.HIGHEST
    u = jnp.einsum("oh,nhwc->nowc", a_h, x, precision=hp)
    u = jnp.einsum("pw,nowc->nopc", a_w, u, precision=hp)
    if x_concat_nchw is not None:
        parts = [u, jnp.transpose(x_concat_nchw, (0, 2, 3, 1)).astype(jnp.float32)]
        if x_res_nchw is not None:
            parts.append(jnp.transpose(x_res_nchw, (0, 2, 3, 1)).astype(jnp.float32))
        u = jnp.concatenate(parts, axis=-1)

    def conv_bn_relu(v, w, g, b):
        y = jax.lax.conv_general_dilated(
            v.astype(jnp.bfloat16), w.astype(jnp.bfloat16), (1, 1), ((1, 1), (1, 1)),
            dimension_numbers=("NHWC", "HWIO", "NHWC"),
            preferred_element_type=jnp.float32)
        m = jnp.mean(y, axis=(0, 1, 2), keepdims=True)
        var = jnp.mean(jnp.square(y - m), axis=(0, 1, 2), keepdims=True)
        return jnp.maximum((y - m) * jax.lax.rsqrt(var + EPS) * g + b, 0.0)

    h1 = conv_bn_relu(u, params["w1"], params["g1"], params["b1"])
    h2 = conv_bn_relu(h1, params["w2"], params["g2"], params["b2"])
    return jnp.transpose(h2, (0, 3, 1, 2))


if __name__ == "__main__":
    key = jax.random.PRNGKey(0)
    kx, kc, kp = jax.random.split(key, 3)

    # DecoderBottleneck(in_channels=8, out_channels=8), scale_factor=2:
    #   x: (2, 4, 8, 8) -> upsample -> (2, 4, 16, 16); skip x_concat: (2, 4, 16, 16)
    n, cx, hin, win = 2, 4, 8, 8
    c_skip, cout = 4, 8

    x = jax.random.normal(kx, (n, cx, hin, win), jnp.float32)
    x_concat = jax.random.normal(kc, (n, c_skip, 2 * hin, 2 * win), jnp.float32)
    params = init_params(kp, cx + c_skip, cout)

    out = decoder_bottleneck_forward(x, params, x_concat_nchw=x_concat, scale_factor=2)
    out = jax.block_until_ready(out)

    ref = _ref_forward(x, params, x_concat_nchw=x_concat, scale_factor=2)
    assert out.shape == (n, cout, 2 * hin, 2 * win), out.shape
    err = float(jnp.max(jnp.abs(out - ref)))
    # Tolerance reflects the bf16 storage of the raw conv1 output (pre-BN) intermediate.
    assert bool(jnp.allclose(out, ref, rtol=2e-2, atol=2e-2)), f"max abs diff = {err}"

    print("KERNEL_OK")
</pallas_src>

<mosaic_0001>
module attributes {stable_mosaic.version = 11 : i64} {
  func.func @_upsample_w_kernel(%arg0: i32, %arg1: i32, %arg2: memref<1x4x8x8xf32, #tpu.memory_space<vmem>>, %arg3: memref<8x16xf32, #tpu.memory_space<vmem>>, %arg4: memref<1x4x8x16xf32, #tpu.memory_space<vmem>>) attributes {dimension_semantics = [#tpu.dimension_semantics<parallel>, #tpu.dimension_semantics<parallel>], iteration_bounds = array<i64: 2, 1>, scalar_prefetch = 0 : i64, scratch_operands = 0 : i64, tpu.core_type = #tpu.core_type<tc>, window_params = [{transform_indices = @transform_0, window_bounds = array<i64: 1, 4, 8, 8>}, {pipeline_mode = #tpu.pipeline_mode<synchronous>, transform_indices = @transform_1, window_bounds = array<i64: 8, 16>}, {transform_indices = @transform_2, window_bounds = array<i64: 1, 4, 8, 16>}]} {
    %c0 = arith.constant 0 : index
    %c0_0 = arith.constant 0 : index
    %c0_1 = arith.constant 0 : index
    %c0_2 = arith.constant 0 : index
    %0 = vector.load %arg2[%c0, %c0_0, %c0_1, %c0_2] : memref<1x4x8x8xf32, #tpu.memory_space<vmem>>, vector<1x4x8x8xf32>
    %1 = vector.shape_cast %0 : vector<1x4x8x8xf32> to vector<4x8x8xf32>
    %2 = vector.shape_cast %1 : vector<4x8x8xf32> to vector<32x8xf32>
    %c0_3 = arith.constant 0 : index
    %c0_4 = arith.constant 0 : index
    %3 = vector.load %arg3[%c0_3, %c0_4] : memref<8x16xf32, #tpu.memory_space<vmem>>, vector<8x16xf32>
    %cst = arith.constant dense<0.000000e+00> : vector<32x16xf32>
    %4 = tpu.matmul %2, %3, %cst {dimension_numbers = #tpu.dot_dimension_numbers<[1], [0], [0], [1], [0, 0, 1, 1], [], []>} : vector<32x8xf32>, vector<8x16xf32>, vector<32x16xf32> -> vector<32x16xf32>
    %5 = vector.shape_cast %4 : vector<32x16xf32> to vector<4x8x16xf32>
    %c0_5 = arith.constant 0 : index
    %c0_6 = arith.constant 0 : index
    %c0_7 = arith.constant 0 : index
    %c0_8 = arith.constant 0 : index
    %6 = vector.load %arg4[%c0_5, %c0_6, %c0_7, %c0_8] : memref<1x4x8x16xf32, #tpu.memory_space<vmem>>, vector<1x4x8x16xf32>
    %7 = vector.shape_cast %6 : vector<1x4x8x16xf32> to vector<4x8x16xf32>
    %8 = vector.shape_cast %5 : vector<4x8x16xf32> to vector<1x4x8x16xf32>
    tpu.vector_store %arg4[%c0_5, %c0_6, %c0_7, %c0_8], %8 {strides = array<i32>} : memref<1x4x8x16xf32, #tpu.memory_space<vmem>>, vector<1x4x8x16xf32>,
    return
  }
  func.func @transform_0(%arg0: i32, %arg1: i32) -> (i32, i32, i32, i32) {
    %c0_i32 = arith.constant 0 : i32
    %c0_i32_0 = arith.constant 0 : i32
    %c0_i32_1 = arith.constant 0 : i32
    return %arg0, %arg1, %c0_i32, %c0_i32_0 : i32, i32, i32, i32
  }
  func.func @transform_1(%arg0: i32, %arg1: i32) -> (i32, i32) {
    %c0_i32 = arith.constant 0 : i32
    %c0_i32_0 = arith.constant 0 : i32
    %c0_i32_1 = arith.constant 0 : i32
    return %c0_i32, %c0_i32_0 : i32, i32
  }
  func.func @transform_2(%arg0: i32, %arg1: i32) -> (i32, i32, i32, i32) {
    %c0_i32 = arith.constant 0 : i32
    %c0_i32_0 = arith.constant 0 : i32
    %c0_i32_1 = arith.constant 0 : i32
    return %arg0, %arg1, %c0_i32, %c0_i32_0 : i32, i32, i32, i32
  }
}

</mosaic_0001>

<llo_original>
// kernel: tpu_custom_call.1
$region0: #{tpu_custom_call.1}
  #allocation0 [shape = 'u32[]', space=smem, size = 0x4, offset = 0x4, fixed_abs, tag = 'smem constant byte address 0x4 - core index']
  #allocation1 [shape = 'u32[72,128]{1,0:T(1,128)}', space=vmem, size = 0x9000, scoped, tag = 'internal scratch']
  %s0 = inlined_call_operand.hbm [shape: f32[2,4,8,8], index: 0, kind: input, shape index: {}]
  %s1 = inlined_call_operand.hbm [shape: f32[8,16], index: 1, kind: input, shape index: {}]
  %s2 = inlined_call_operand.hbm [shape: f32[2,4,8,16], index: 2, kind: output, shape index: {}]
  %s3 = sld [smem:[#allocation0]]
  $region49: #{tpu_custom_call.1} parent=0
    _
  %s5 = ssub.s32 1, %s3
  %s6 = scalar_select 0, %s5, %s3
  $region1: #{tpu_custom_call.1} parent=0
    #allocation2 [shape = 'u8[32768]{0}', space=vmem, size = 0x8000, scoped, tag = 'input window, operand 0']
    #allocation3 [shape = 's32[2]{0}', space=sflag, size = 0x8, scoped, tag = 'scoped memory for tpu_custom_call.1']
    #allocation4 [shape = 's32[2]{0}', space=sflag, size = 0x8, scoped, tag = 'scoped memory for tpu_custom_call.1']
    #allocation5 [shape = 'u8[4096]{0}', space=vmem, size = 0x1000, scoped, tag = 'input window, operand 1, single buffered']
    #allocation6 [shape = 's32[1]{0}', space=sflag, size = 0x4, scoped, tag = 'scoped memory for tpu_custom_call.1']
    #allocation7 [shape = 'u8[32768]{0}', space=vmem, size = 0x8000, scoped, tag = 'output window, operand 0']
    %7 = vsyncpa [#allocation3], 0
    %s8 = scalar_lea.sflag [#allocation3], 1
    %9 = vsyncpa %s8, 0
    %10 = vsyncpa [#allocation6], 0
    %11 = vsyncpa [#allocation4], 0
    %s12 = scalar_lea.sflag [#allocation4], 1
    %13 = vsyncpa %s12, 0
    loop: start=0, step=1, limit=4
    $region2: #{tpu_custom_call.1} parent=1 // loop_pre_header
      _
    $region3: #{tpu_custom_call.1} parent=1 // loop_header
      %s15 = sphi 0, %s19
      %p16 = scmp.ge.s32.totalorder %s15, 4
      %s22 = sphi 0, %s34
      %s23 = sphi 0, %s30
      %s24 = sphi 0, %s22
      %s25 = sphi 0, %s23
      %s26 = sphi 0, %s24
      %s27 = sphi 0, %s25
      %s39 = sphi 0, %s41
      %s42 = sphi 0, %s39
      %s43 = sphi 0, %s42
      %s59 = sphi 0, %s43
      %s63 = sphi 0, %s63
      %s65 = sphi 0, %s63
      %s66 = sphi 0, %s65
      %s80 = sphi 0, %s66
      %s88 = sphi 0, %s90
      %s91 = sphi 0, %s88
      %s92 = sphi 0, %s91
      %s108 = sphi 0, %s92
    $region4: #{tpu_custom_call.1} parent=1 // loop_header_branch
      %18 = sbr.rel (%p16) target = $region8
    $region5: #{tpu_custom_call.1} parent=1 // loop_body
      %s20 = ssub.s32 %s15, 1
      %s21 = ssub.s32 %s15, 2
      %s28 = sadd.s32 1, %s23
      %p29 = scmp.ge.s32.totalorder %s28, 1
      %s30 = scalar_select %p29, 0, %s28
      %s31 = sadd.s32 1, %s22
      %s32 = scalar_select %p29, %s31, %s22
      %p33 = scmp.ge.s32.totalorder %s32, 2
      %s34 = scalar_select %p33, 0, %s32
      %s35 = ssub.s32 %s22, %s34
      %s36 = ssub.s32 %s23, %s30
      %s37 = sor.u32 %s35, %s36
      %p38 = scmp.eq.s32.totalorder %s37, 0
      %s40 = sadd.s32 %s39, 1
      %s41 = scalar_select %p38, %s39, %s40
      %p44 = pneg %p38
      %p45 = scmp.eq.s32.totalorder %s15, 1
      %p46 = por %p44, %p45
      %p47 = scmp.ne.s32.totalorder %s39, %s42
      %p48 = scmp.eq.s32.totalorder %s15, 0
      %p49 = por %p47, %p48
      %p50 = scmp.ne.s32.totalorder %s39, %s42
      %p51 = scmp.eq.s32.totalorder %s20, 1
      %p52 = por %p50, %p51
      %p53 = scmp.ne.s32.totalorder %s42, %s43
      %p54 = scmp.eq.s32.totalorder %s20, 0
      %p55 = por %p53, %p54
      %p56 = scmp.ne.s32.totalorder %s42, %s43
      %p57 = scmp.eq.s32.totalorder %s21, 1
      %p58 = por %p56, %p57
      %p60 = scmp.ne.s32.totalorder %s43, %s59
      %p61 = scmp.eq.s32.totalorder %s21, 0
      %p62 = por %p60, %p61
      %s64 = sadd.s32 %s63, 1
      %p67 = scmp.eq.s32.totalorder %s15, 1
      %p68 = scmp.ne.s32.totalorder %s63, %s65
      %p69 = scmp.eq.s32.totalorder %s15, 0
      %p70 = por %p68, %p69
      %p71 = scmp.ne.s32.totalorder %s63, %s65
      %p72 = scmp.eq.s32.totalorder %s20, 1
      %p73 = por %p71, %p72
      %p74 = scmp.ne.s32.totalorder %s65, %s66
      %p75 = scmp.eq.s32.totalorder %s20, 0
      %p76 = por %p74, %p75
      %p77 = scmp.ne.s32.totalorder %s65, %s66
      %p78 = scmp.eq.s32.totalorder %s21, 1
      %p79 = por %p77, %p78
      %p81 = scmp.ne.s32.totalorder %s66, %s80
      %p82 = scmp.eq.s32.totalorder %s21, 0
      %p83 = por %p81, %p82
      %s84 = ssub.s32 %s22, %s34
      %s85 = ssub.s32 %s23, %s30
      %s86 = sor.u32 %s84, %s85
      %p87 = scmp.eq.s32.totalorder %s86, 0
      %s89 = sadd.s32 %s88, 1
      %s90 = scalar_select %p87, %s88, %s89
      %p93 = pneg %p87
      %p94 = scmp.eq.s32.totalorder %s15, 1
      %p95 = por %p93, %p94
      %p96 = scmp.ne.s32.totalorder %s88, %s91
      %p97 = scmp.eq.s32.totalorder %s15, 0
      %p98 = por %p96, %p97
      %p99 = scmp.ne.s32.totalorder %s88, %s91
      %p100 = scmp.eq.s32.totalorder %s20, 1
      %p101 = por %p99, %p100
      %p102 = scmp.ne.s32.totalorder %s91, %s92
      %p103 = scmp.eq.s32.totalorder %s20, 0
      %p104 = por %p102, %p103
      %p105 = scmp.ne.s32.totalorder %s91, %s92
      %p106 = scmp.eq.s32.totalorder %s21, 1
      %p107 = por %p105, %p106
      %p109 = scmp.ne.s32.totalorder %s92, %s108
      %p110 = scmp.eq.s32.totalorder %s21, 0
      %p111 = por %p109, %p110
      %p112 = scmp.le.s32.totalorder 1, %s15
      %p113 = scmp.lt.s32.totalorder %s15, 3
      %p114 = pnand %p112, %p113
      %p115 = pneg %p114
      // Predicated region
      $region9: #{tpu_custom_call.1} parent=5 // pred_check
        _
      $region10: #{tpu_custom_call.1} parent=5 // pred_check_branch
        %117 = sbr.rel (%p114) target = $region12
      $region11: #{tpu_custom_call.1} parent=5 // pred_region
        %s118 = ssub.s32 %s15, 1
        // Predicated region
        $region13: #{tpu_custom_call.1} parent=11 // pred_check
          %p119 = pneg %p76
        $region14: #{tpu_custom_call.1} parent=11 // pred_check_branch
          %121 = sbr.rel (%p119) target = $region16
        $region15: #{tpu_custom_call.1} parent=11 // pred_region
          %123 = vsyncadd [#allocation6], 0
          %s125 = sshll.u32 %s1, 4
          %s126 = int_to_ptr.hbm [resolvable:$true] %s125
          %s127 = sshll.u32 [#allocation5], 4
          %s128 = int_to_ptr.vmem [resolvable:$true] %s127
          %130 = dma.hbm_to_vmem [thread:$0]  %s126, 128, %s128, [#allocation6]
        $region16: #{tpu_custom_call.1} parent=11 // pred_fallthru
          _
      $region12: #{tpu_custom_call.1} parent=5 // pred_fallthru
        _
      %p131 = scmp.lt.s32.totalorder %s15, 2
      // Predicated region
      $region17: #{tpu_custom_call.1} parent=5 // pred_check
        %p132 = pneg %p131
      $region18: #{tpu_custom_call.1} parent=5 // pred_check_branch
        %134 = sbr.rel (%p132) target = $region20
      $region19: #{tpu_custom_call.1} parent=5 // pred_region
        // Predicated region
        $region21: #{tpu_custom_call.1} parent=19 // pred_check
          %p135 = pneg %p49
        $region22: #{tpu_custom_call.1} parent=19 // pred_check_branch
          %137 = sbr.rel (%p135) target = $region24
        $region23: #{tpu_custom_call.1} parent=19 // pred_region
          %s138 = sand.u32 %s39, 1
          %s139 = scalar_lea.sflag [#allocation3], %s138
          %s140 = sand.u32 %s39, 1
          %s141 = smul.addr %s140, 32
          %s142 = scalar_lea.vmem [#allocation2], %s141
          %s143 = smul.u32 4, %s23
          %145 = vsyncadd %s139, 0
          %s146 = smul.addr %s22, 4
          %s147 = sadd.s32 %s143, %s146
          %s148 = smul.addr %s147, 8
          %s149 = scalar_lea.hbm %s0, %s148
          %s150 = sshll.u32 %s149, 4
          %s151 = int_to_ptr.hbm [resolvable:$true] %s150
          %s152 = sshll.u32 %s142, 4
          %s153 = int_to_ptr.vmem [resolvable:$true] %s152
          %158 = dma.hbm_to_vmem [thread:$0]  %s151, 512, %s153, %s139, 128, 128, 8
        $region24: #{tpu_custom_call.1} parent=19 // pred_fallthru
          _
      $region20: #{tpu_custom_call.1} parent=5 // pred_fallthru
        _
      %p159 = scmp.le.s32.totalorder 1, %s15
      %p160 = scmp.lt.s32.totalorder %s15, 3
      %p161 = pnand %p159, %p160
      %p162 = pneg %p161
      // Predicated region
      $region25: #{tpu_custom_call.1} parent=5 // pred_check
        _
      $region26: #{tpu_custom_call.1} parent=5 // pred_check_branch
        %164 = sbr.rel (%p161) target = $region28
      $region27: #{tpu_custom_call.1} parent=5 // pred_region
        %s165 = ssub.s32 %s15, 1
        %s166 = sand.u32 %s42, 1
        %s167 = scalar_lea.sflag [#allocation3], %s166
        %s168 = sand.u32 %s42, 1
        %s169 = smul.addr %s168, 32
        %s170 = scalar_lea.vmem [#allocation2], %s169
        // Predicated region
        $region29: #{tpu_custom_call.1} parent=27 // pred_check
          %p171 = pneg %p55
        $region30: #{tpu_custom_call.1} parent=27 // pred_check_branch
          %173 = sbr.rel (%p171) target = $region32
        $region31: #{tpu_custom_call.1} parent=27 // pred_region
          %175 = dma.done %s167, 512
        $region32: #{tpu_custom_call.1} parent=27 // pred_fallthru
          _
        // Predicated region
        $region33: #{tpu_custom_call.1} parent=27 // pred_check
          %p176 = pneg %p76
        $region34: #{tpu_custom_call.1} parent=27 // pred_check_branch
          %178 = sbr.rel (%p176) target = $region36
        $region35: #{tpu_custom_call.1} parent=27 // pred_region
          %180 = dma.done [#allocation6], 128
        $region36: #{tpu_custom_call.1} parent=27 // pred_fallthru
          _
        %s181 = sand.u32 %s42, 1
        %s182 = scalar_lea.sflag [#allocation3], %s181
        %s183 = sand.u32 %s42, 1
        %s184 = smul.addr %s183, 32
        %s185 = scalar_lea.vmem [#allocation2], %s184
        %p186 = pneg %p55
        %p187 = pneg %p52
        %p188 = pneg %p76
        %p189 = pneg %p73
        %p190 = pneg %p104
        %p191 = pneg %p101
        %s192 = sand.u32 %s91, 1
        %s193 = scalar_lea.sflag [#allocation4], %s192
        %s194 = sand.u32 %s91, 1
        %s195 = smul.addr %s194, 32
        %s196 = scalar_lea.vmem [#allocation7], %s195
        %s197 = smul.u32 4, %s25
        %s198 = smul.u32 4, %s25
        %v199 = vld [vmem:[%s170] sm:$0xff]
        %v200 = vld [vmem:[%s170 + $0x8] sm:$0xff]
        %v201 = vld [vmem:[%s170 + $0x10] sm:$0xff]
        %v202 = vld [vmem:[%s170 + $0x18] sm:$0xff]
        %v203 = vld [vmem:[#allocation5] sm:$0xff]
        %vm204 = vcmask 64512
        %v206 = vsel %vm204, %v199, 0
        %v209 = vsel %vm204, %v200, 0
        %v212 = vsel %vm204, %v201, 0
        %v215 = vsel %vm204, %v202, 0
        %217 = vmatpush.msra.mxu0 0.0
        %218 = vmatpush.msra.mxu0 0.0
        %219 = vmatpush.msra.mxu0 0.0
        %220 = vmatpush.msra.mxu0 0.0
        %221 = vmatpush.msra.mxu0 0.0
        %222 = vmatpush.msra.mxu0 0.0
        %223 = vmatpush.msra.mxu0 0.0
        %224 = vmatpush.msra.mxu0 0.0
        %225 = vmatpush.msra.mxu0 0.0
        %226 = vmatpush.msra.mxu0 0.0
        %227 = vmatpush.msra.mxu0 0.0
        %228 = vmatpush.msra.mxu0 0.0
        %229 = vmatpush.msra.mxu0 0.0
        %230 = vmatpush.msra.mxu0 0.0
        %231 = vmatpush.msra.mxu0 0.0
        %232 = vmatpush.msra.mxu0 %v203
        %233 = vmatmul.f32.gmra.mxu0 %v206
        %v234 = vpop.f32.mrf.mxu0
        %v235 = vadd.f32 0.0, %v234
        %236 = vmatmul.f32.gmra.mxu0 %v209
        %v237 = vpop.f32.mrf.mxu0
        %v238 = vadd.f32 0.0, %v237
        %239 = vmatmul.f32.gmra.mxu0 %v212
        %v240 = vpop.f32.mrf.mxu0
        %v241 = vadd.f32 0.0, %v240
        %242 = vmatmul.f32.gmra.mxu0 %v215
        %v243 = vpop.f32.mrf.mxu0
        %v244 = vadd.f32 0.0, %v243
        %245 = vdwg.mxu0
        %vm246 = vcmask 130048
        %247 = vst.msk [vmem:[%s196] sm:$0xff] %vm246, %v235
        %248 = vst.msk [vmem:[%s196 + $0x8] sm:$0xff] %vm246, %v238
        %249 = vst.msk [vmem:[%s196 + $0x10] sm:$0xff] %vm246, %v241
        %250 = vst.msk [vmem:[%s196 + $0x18] sm:$0xff] %vm246, %v244
        %s251 = sand.u32 %s91, 1
        %s252 = scalar_lea.sflag [#allocation4], %s251
        %s253 = sand.u32 %s91, 1
        %s254 = smul.addr %s253, 32
        %s255 = scalar_lea.vmem [#allocation7], %s254
        // Predicated region
        $region37: #{tpu_custom_call.1} parent=27 // pred_check
          %p256 = pneg %p101
        $region38: #{tpu_custom_call.1} parent=27 // pred_check_branch
          %258 = sbr.rel (%p256) target = $region40
        $region39: #{tpu_custom_call.1} parent=27 // pred_region
          %s259 = smul.u32 4, %s25
          %261 = vsyncadd %s252, 0
          %s262 = smul.addr %s24, 4
          %s263 = sadd.s32 %s259, %s262
          %s264 = smul.addr %s263, 8
          %s265 = scalar_lea.hbm %s2, %s264
          %s266 = sshll.u32 %s255, 4
          %s267 = int_to_ptr.vmem [resolvable:$true] %s266
          %s268 = sshll.u32 %s265, 4
          %s269 = int_to_ptr.hbm [resolvable:$true] %s268
          %274 = dma.vmem_to_hbm [thread:$0]  %s267, 512, %s269, %s252, 128, 128, 8
        $region40: #{tpu_custom_call.1} parent=27 // pred_fallthru
          _
      $region28: #{tpu_custom_call.1} parent=5 // pred_fallthru
        _
      %p275 = scmp.le.s32.totalorder 2, %s15
      // Predicated region
      $region41: #{tpu_custom_call.1} parent=5 // pred_check
        %p276 = pneg %p275
      $region42: #{tpu_custom_call.1} parent=5 // pred_check_branch
        %278 = sbr.rel (%p276) target = $region44
      $region43: #{tpu_custom_call.1} parent=5 // pred_region
        %s279 = ssub.s32 %s15, 2
        // Predicated region
        $region45: #{tpu_custom_call.1} parent=43 // pred_check
          %p280 = pneg %p107
        $region46: #{tpu_custom_call.1} parent=43 // pred_check_branch
          %282 = sbr.rel (%p280) target = $region48
        $region47: #{tpu_custom_call.1} parent=43 // pred_region
          %s283 = sand.u32 %s92, 1
          %s284 = scalar_lea.sflag [#allocation4], %s283
          %s285 = sand.u32 %s92, 1
          %s286 = smul.addr %s285, 32
          %s287 = scalar_lea.vmem [#allocation7], %s286
          %289 = dma.done %s284, 512
        $region48: #{tpu_custom_call.1} parent=43 // pred_fallthru
          _
      $region44: #{tpu_custom_call.1} parent=5 // pred_fallthru
        _
    $region6: #{tpu_custom_call.1} parent=1 // loop_footer
      %s19 = sadd.s32 1, %s15
    $region7: #{tpu_custom_call.1} parent=1 // loop_footer_branch
      %14 = sbr.rel target = $region3
    $region8: #{tpu_custom_call.1} parent=1 // loop_exit
      _
    %290 = vsyncpa [#allocation3], 1
    %s291 = scalar_lea.sflag [#allocation3], 1
    %292 = vsyncpa %s291, 1
    %293 = vsyncpa [#allocation6], 1
    %294 = vsyncpa [#allocation4], 1
    %s295 = scalar_lea.sflag [#allocation4], 1
    %296 = vsyncpa %s295, 1

</llo_original>
